<compile_context>
chip_gen: v5e
topology: v5e:2x2
jax: 0.10.0
libtpu: 0.0.40
codegen_flags: <defaults>
</compile_context>

<pallas_src>
import functools

import jax
import jax.numpy as jnp
from jax import lax
from jax.experimental import pallas as pl
from jax.experimental.pallas import tpu as pltpu


def _round_up(v, m):
    return ((v + m - 1) // m) * m


def _fold_bn(w, b, gamma, beta, mean, var, eps=1e-5):
    """Eval-mode BatchNorm1d folded into the preceding 1x1 conv."""
    s = gamma / jnp.sqrt(var + eps)
    return w * s[:, None], s * (b - mean) + beta


def _sa_kernel(mp, d_real, apply_mask,
               x_ref, wf_ref, wgh_ref, b_ref, wv_ref, o_ref):
    """One (batch, query-tile) step.

    x_ref   : (1, C, Dp)      full key axis for this sample
    wf_ref  : (Mp, C)         f conv (BN + M^-0.5 scale folded)
    wgh_ref : (2*Mp, C)       [g conv (BN folded); h conv]
    b_ref   : (3*Mp + C, 1)   stacked biases [bf; bg; bh; bv]
    wv_ref  : (C, Mp)         v conv
    o_ref   : (1, C, TQ)      output query tile
    """
    tq = o_ref.shape[2]
    qs = pl.multiple_of(pl.program_id(1) * tq, tq)

    x = x_ref[0]                                   # (C, Dp)  f32
    x_q = x_ref[0, :, pl.ds(qs, tq)]               # (C, TQ)  f32
    b = b_ref[...]                                 # (3Mp + C, 1)

    # fused g/h projections over the full key axis (one MXU launch)
    gh = jnp.dot(wgh_ref[...], x, preferred_element_type=jnp.float32) + b[mp:3 * mp]
    gx = jnp.maximum(gh[:mp], 0.0)                 # (Mp, Dp)
    hx = gh[mp:]                                   # (Mp, Dp)

    # f projection only on the query tile (softmax scale already folded in)
    fx_q = jnp.maximum(
        jnp.dot(wf_ref[...], x_q, preferred_element_type=jnp.float32) + b[:mp],
        0.0)                                       # (Mp, TQ)

    # scores[q, k] = sum_m fx_q[m, q] * gx[m, k]: contraction over the tiny Mp
    # axis -- any transpose falls on the small (Mp, TQ) operand, never (TQ, Dp).
    scores = lax.dot_general(
        fx_q.astype(jnp.bfloat16), gx.astype(jnp.bfloat16),
        (((0,), (0,)), ((), ())),
        preferred_element_type=jnp.float32)        # (TQ, Dp)

    if apply_mask:  # only emitted when D needed lane padding (static check)
        key_ids = lax.broadcasted_iota(jnp.int32, scores.shape, 1)
        scores = jnp.where(key_ids < d_real, scores, -1e30)

    # numerically-stable softmax over keys; reciprocal goes to the EUP slot
    m = jnp.max(scores, axis=-1, keepdims=True)
    e = jnp.exp(scores - m)
    s = jnp.sum(e, axis=-1, keepdims=True)
    attn = (e * pl.reciprocal(s, approx=True)).astype(jnp.bfloat16)   # (TQ, Dp)

    # z^T[q, m] = sum_k attn[q, k] * hx[m, k]   (transpose falls on small hx)
    zt = lax.dot_general(attn, hx.astype(jnp.bfloat16),
                         (((1,), (1,)), ((), ())),
                         preferred_element_type=jnp.float32)          # (TQ, Mp)

    # out = wv @ z + bv + x_q                    (transpose falls on small zt)
    out = lax.dot_general(wv_ref[...], zt, (((1,), (1,)), ((), ())),
                          preferred_element_type=jnp.float32)         # (C, TQ)
    o_ref[0] = (out + b[3 * mp:] + x_q).astype(o_ref.dtype)


def self_attention_forward(x, params, mid_ch):
    """Pallas forward of SelfAttention_layer.  x: (B, C, D) float32."""
    B, C, D = x.shape
    M = mid_ch
    Mp = _round_up(max(M, 8), 8)
    Dp = _round_up(max(D, 128), 128)
    f32 = jnp.float32

    # query tile: largest of these dividing Dp (Dp is always a multiple of 128)
    tq = 128
    for cand in (512, 384, 256):
        if Dp % cand == 0:
            tq = cand
            break

    # fold eval-mode BN into f/g convs; fold the M^-0.5 softmax scale into f
    # (scale > 0 commutes with ReLU:  relu(s*(wx+b)) = s*relu(wx+b))
    scale = float(M) ** -0.5
    wf, bf = _fold_bn(params["wf"], params["bf"], params["gf"], params["betf"],
                      params["mf"], params["vf"])
    wg, bg = _fold_bn(params["wg"], params["bg"], params["gg"], params["betg"],
                      params["mg"], params["vg"])
    wf, bf = wf * scale, bf * scale
    wh, bh = params["wh"], params["bh"]
    wv, bv = params["wv"], params["bv"]

    def pad_rows(a, r):
        a = a.astype(f32)
        return jnp.pad(a, ((0, r - a.shape[0]),) + ((0, 0),) * (a.ndim - 1))

    wf_p = pad_rows(wf, Mp)                                                 # (Mp, C)
    wgh_p = jnp.concatenate([pad_rows(wg, Mp), pad_rows(wh, Mp)], axis=0)   # (2Mp, C)
    wv_p = jnp.pad(wv.astype(f32), ((0, 0), (0, Mp - wv.shape[1])))         # (C, Mp)
    b_all = jnp.concatenate([pad_rows(bf, Mp), pad_rows(bg, Mp),
                             pad_rows(bh, Mp), bv.astype(f32)])[:, None]    # (3Mp+C, 1)

    x_p = x.astype(f32)
    if Dp != D:  # only pad the length axis when it is not lane-aligned
        x_p = jnp.pad(x_p, ((0, 0), (0, 0), (0, Dp - D)))

    kernel = functools.partial(_sa_kernel, Mp, D, Dp != D)

    out = pl.pallas_call(
        kernel,
        out_shape=jax.ShapeDtypeStruct((B, C, Dp), f32),
        grid_spec=pltpu.PrefetchScalarGridSpec(
            num_scalar_prefetch=0,
            grid=(B, Dp // tq),
            in_specs=[
                pl.BlockSpec((1, C, Dp), lambda b, q: (b, 0, 0)),      # x (full keys)
                pl.BlockSpec((Mp, C), lambda b, q: (0, 0)),            # wf
                pl.BlockSpec((2 * Mp, C), lambda b, q: (0, 0)),        # [wg; wh]
                pl.BlockSpec((3 * Mp + C, 1), lambda b, q: (0, 0)),    # stacked biases
                pl.BlockSpec((C, Mp), lambda b, q: (0, 0)),            # wv
            ],
            out_specs=pl.BlockSpec((1, C, tq), lambda b, q: (b, 0, q)),
        ),
        compiler_params=pltpu.CompilerParams(
            # every (sample, query-tile) output block is independent
            dimension_semantics=("parallel", "parallel"),
            # raise the default scoped-VMEM limit (16/32 MiB) while staying
            # well inside v7x's 64 MiB physical VMEM
            vmem_limit_bytes=48 * 1024 * 1024,
        ),
    )(x_p, wf_p, wgh_p, b_all, wv_p)

    if Dp != D:
        out = out[:, :, :D]
    return out


def self_attention_ref(x, params, mid_ch):
    """Pure-JAX reference (eval-mode BN), for correctness checking."""
    wf, bf = _fold_bn(params["wf"], params["bf"], params["gf"], params["betf"],
                      params["mf"], params["vf"])
    wg, bg = _fold_bn(params["wg"], params["bg"], params["gg"], params["betg"],
                      params["mg"], params["vg"])
    wh, bh = params["wh"], params["bh"]
    wv, bv = params["wv"], params["bv"]

    def conv1x1(w, b, t):
        return jnp.einsum("oc,bcd->bod", w, t) + b[None, :, None]

    fx = jax.nn.relu(conv1x1(wf, bf, x))
    gx = jax.nn.relu(conv1x1(wg, bg, x))
    hx = conv1x1(wh, bh, x)
    z = jnp.einsum("bmq,bmk->bqk", fx, gx)
    attn = jax.nn.softmax(z * float(mid_ch) ** -0.5, axis=-1)
    z2 = jnp.einsum("bqk,bmk->bmq", attn, hx)      # == (attn @ hx^T)^T
    return conv1x1(wv, bv, z2) + x


def _make_params(key, in_ch, mid_ch):
    ks = jax.random.split(key, 16)

    def kaiming(kk, shape, fan_in):
        return jax.random.normal(kk, shape, jnp.float32) * (2.0 / fan_in) ** 0.5

    return {
        # f branch: Conv1d + BatchNorm1d(running stats) + ReLU
        "wf": kaiming(ks[0], (mid_ch, in_ch), in_ch),
        "bf": 0.05 * jax.random.normal(ks[1], (mid_ch,), jnp.float32),
        "gf": 1.0 + 0.1 * jax.random.normal(ks[2], (mid_ch,), jnp.float32),
        "betf": 0.1 * jax.random.normal(ks[3], (mid_ch,), jnp.float32),
        "mf": 0.1 * jax.random.normal(ks[4], (mid_ch,), jnp.float32),
        "vf": jax.random.uniform(ks[5], (mid_ch,), jnp.float32, 0.5, 1.5),
        # g branch
        "wg": kaiming(ks[6], (mid_ch, in_ch), in_ch),
        "bg": 0.05 * jax.random.normal(ks[7], (mid_ch,), jnp.float32),
        "gg": 1.0 + 0.1 * jax.random.normal(ks[8], (mid_ch,), jnp.float32),
        "betg": 0.1 * jax.random.normal(ks[9], (mid_ch,), jnp.float32),
        "mg": 0.1 * jax.random.normal(ks[10], (mid_ch,), jnp.float32),
        "vg": jax.random.uniform(ks[11], (mid_ch,), jnp.float32, 0.5, 1.5),
        # h branch (plain conv)
        "wh": kaiming(ks[12], (mid_ch, in_ch), in_ch),
        "bh": 0.05 * jax.random.normal(ks[13], (mid_ch,), jnp.float32),
        # NOTE: the PyTorch module's constant_init only matches Conv2d, so the
        # 1x1 Conv1d `v` keeps a non-zero init; random weights here actually
        # exercise the attention path (forward semantics unchanged).
        "wv": kaiming(ks[14], (in_ch, mid_ch), max(mid_ch, 1)),
        "bv": 0.05 * jax.random.normal(ks[15], (in_ch,), jnp.float32),
    }


if __name__ == "__main__":
    root = jax.random.PRNGKey(0)

    # case 1: lane-aligned D (no pad / no mask path)
    # case 2: unaligned D + mid_ch < 8 padding + key-mask path
    for case, (B, in_ch, k, D) in enumerate([(2, 4, 1, 128), (1, 6, 2, 100)]):
        mid_ch = in_ch // k
        pkey, xkey = jax.random.split(jax.random.fold_in(root, case))
        params = _make_params(pkey, in_ch, mid_ch)
        x = jax.random.normal(xkey, (B, in_ch, D), jnp.float32)

        out = jax.block_until_ready(self_attention_forward(x, params, mid_ch))
        ref = self_attention_ref(x, params, mid_ch)

        assert out.shape == (B, in_ch, D), out.shape
        max_err = float(jnp.max(jnp.abs(out - ref)))
        # bf16 MXU operands on the two Dp-sized matmuls -> slightly loosened tol
        assert jnp.allclose(out, ref, atol=5e-2, rtol=5e-2), ("max_err", max_err)

    print("KERNEL_OK")
</pallas_src>

<mosaic_0001>
module attributes {stable_mosaic.version = 11 : i64} {
  func.func @_sa_kernel(%arg0: i32, %arg1: i32, %arg2: memref<1x4x128xf32, #tpu.memory_space<vmem>>, %arg3: memref<8x4xf32, #tpu.memory_space<vmem>>, %arg4: memref<16x4xf32, #tpu.memory_space<vmem>>, %arg5: memref<28x1xf32, #tpu.memory_space<vmem>>, %arg6: memref<4x8xf32, #tpu.memory_space<vmem>>, %arg7: memref<1x4x128xf32, #tpu.memory_space<vmem>>) attributes {dimension_semantics = [#tpu.dimension_semantics<parallel>, #tpu.dimension_semantics<parallel>], iteration_bounds = array<i64: 2, 1>, scalar_prefetch = 0 : i64, scratch_operands = 0 : i64, tpu.core_type = #tpu.core_type<tc>, window_params = [{transform_indices = @transform_0, window_bounds = array<i64: 1, 4, 128>}, {pipeline_mode = #tpu.pipeline_mode<synchronous>, transform_indices = @transform_1, window_bounds = array<i64: 8, 4>}, {pipeline_mode = #tpu.pipeline_mode<synchronous>, transform_indices = @transform_2, window_bounds = array<i64: 16, 4>}, {pipeline_mode = #tpu.pipeline_mode<synchronous>, transform_indices = @transform_3, window_bounds = array<i64: 28, 1>}, {pipeline_mode = #tpu.pipeline_mode<synchronous>, transform_indices = @transform_4, window_bounds = array<i64: 4, 8>}, {transform_indices = @transform_5, window_bounds = array<i64: 1, 4, 128>}]} {
    %c128_i32 = arith.constant 128 : i32
    %0 = arith.muli %arg1, %c128_i32 : i32
    %1 = tpu.assume_multiple %0, 128 : i32
    %c0 = arith.constant 0 : index
    %c0_0 = arith.constant 0 : index
    %c0_1 = arith.constant 0 : index
    %2 = vector.load %arg2[%c0, %c0_0, %c0_1] : memref<1x4x128xf32, #tpu.memory_space<vmem>>, vector<1x4x128xf32>
    %3 = vector.shape_cast %2 : vector<1x4x128xf32> to vector<4x128xf32>
    %c0_2 = arith.constant 0 : index
    %c0_3 = arith.constant 0 : index
    %4 = arith.index_cast %1 : i32 to index
    %5 = vector.load %arg2[%c0_2, %c0_3, %4] : memref<1x4x128xf32, #tpu.memory_space<vmem>>, vector<1x4x128xf32>
    %6 = vector.shape_cast %5 : vector<1x4x128xf32> to vector<4x128xf32>
    %c0_4 = arith.constant 0 : index
    %c0_5 = arith.constant 0 : index
    %7 = vector.load %arg5[%c0_4, %c0_5] : memref<28x1xf32, #tpu.memory_space<vmem>>, vector<28x1xf32>
    %c0_6 = arith.constant 0 : index
    %c0_7 = arith.constant 0 : index
    %8 = vector.load %arg4[%c0_6, %c0_7] : memref<16x4xf32, #tpu.memory_space<vmem>>, vector<16x4xf32>
    %cst = arith.constant dense<0.000000e+00> : vector<16x128xf32>
    %9 = tpu.matmul %8, %3, %cst {dimension_numbers = #tpu.dot_dimension_numbers<[1], [0], [0], [1], [0, 0, 1, 1], [], []>} : vector<16x4xf32>, vector<4x128xf32>, vector<16x128xf32> -> vector<16x128xf32>
    %10 = vector.extract_strided_slice %7 {offsets = [8, 0], sizes = [16, 1], strides = [1, 1]} : vector<28x1xf32> to vector<16x1xf32>
    %11 = vector.broadcast %10 : vector<16x1xf32> to vector<16x128xf32>
    %12 = arith.addf %9, %11 : vector<16x128xf32>
    %13 = vector.extract_strided_slice %12 {offsets = [0, 0], sizes = [8, 128], strides = [1, 1]} : vector<16x128xf32> to vector<8x128xf32>
    %cst_8 = arith.constant 0.000000e+00 : f32
    %14 = vector.broadcast %cst_8 : f32 to vector<8x128xf32>
    %15 = arith.maximumf %13, %14 : vector<8x128xf32>
    %16 = vector.extract_strided_slice %12 {offsets = [8, 0], sizes = [8, 128], strides = [1, 1]} : vector<16x128xf32> to vector<8x128xf32>
    %c0_9 = arith.constant 0 : index
    %c0_10 = arith.constant 0 : index
    %17 = vector.load %arg3[%c0_9, %c0_10] : memref<8x4xf32, #tpu.memory_space<vmem>>, vector<8x4xf32>
    %cst_11 = arith.constant dense<0.000000e+00> : vector<8x128xf32>
    %18 = tpu.matmul %17, %6, %cst_11 {dimension_numbers = #tpu.dot_dimension_numbers<[1], [0], [0], [1], [0, 0, 1, 1], [], []>} : vector<8x4xf32>, vector<4x128xf32>, vector<8x128xf32> -> vector<8x128xf32>
    %19 = vector.extract_strided_slice %7 {offsets = [0, 0], sizes = [8, 1], strides = [1, 1]} : vector<28x1xf32> to vector<8x1xf32>
    %20 = vector.broadcast %19 : vector<8x1xf32> to vector<8x128xf32>
    %21 = arith.addf %18, %20 : vector<8x128xf32>
    %cst_12 = arith.constant 0.000000e+00 : f32
    %22 = vector.broadcast %cst_12 : f32 to vector<8x128xf32>
    %23 = arith.maximumf %21, %22 : vector<8x128xf32>
    %24 = arith.truncf %23 : vector<8x128xf32> to vector<8x128xbf16>
    %25 = arith.truncf %15 : vector<8x128xf32> to vector<8x128xbf16>
    %cst_13 = arith.constant dense<0.000000e+00> : vector<128x128xf32>
    %26 = tpu.matmul %24, %25, %cst_13 {dimension_numbers = #tpu.dot_dimension_numbers<[0], [0], [1], [1], [0, 1, 1, 1], [], []>} : vector<8x128xbf16>, vector<8x128xbf16>, vector<128x128xf32> -> vector<128x128xf32>
    %cst_14 = arith.constant dense<0xFF800000> : vector<128xf32>
    %27 = vector.multi_reduction <maximumf>, %26, %cst_14 [1] : vector<128x128xf32> to vector<128xf32>
    %28 = vector.shape_cast %27 : vector<128xf32> to vector<128x1xf32>
    %29 = vector.broadcast %28 : vector<128x1xf32> to vector<128x128xf32>
    %30 = arith.subf %26, %29 : vector<128x128xf32>
    %31 = math.exp %30 : vector<128x128xf32>
    %cst_15 = arith.constant dense<0.000000e+00> : vector<128xf32>
    %32 = vector.multi_reduction <add>, %31, %cst_15 [1] : vector<128x128xf32> to vector<128xf32>
    %33 = vector.shape_cast %32 : vector<128xf32> to vector<128x1xf32>
    %34 = tpu.reciprocal %33 {approx = true} : vector<128x1xf32> -> vector<128x1xf32>
    %35 = vector.broadcast %34 : vector<128x1xf32> to vector<128x128xf32>
    %36 = arith.mulf %31, %35 : vector<128x128xf32>
    %37 = arith.truncf %36 : vector<128x128xf32> to vector<128x128xbf16>
    %38 = arith.truncf %16 : vector<8x128xf32> to vector<8x128xbf16>
    %cst_16 = arith.constant dense<0.000000e+00> : vector<128x8xf32>
    %39 = tpu.matmul %37, %38, %cst_16 {dimension_numbers = #tpu.dot_dimension_numbers<[1], [1], [0], [0], [0, 0, 1, 0], [], []>} : vector<128x128xbf16>, vector<8x128xbf16>, vector<128x8xf32> -> vector<128x8xf32>
    %c0_17 = arith.constant 0 : index
    %c0_18 = arith.constant 0 : index
    %40 = vector.load %arg6[%c0_17, %c0_18] : memref<4x8xf32, #tpu.memory_space<vmem>>, vector<4x8xf32>
    %cst_19 = arith.constant dense<0.000000e+00> : vector<4x128xf32>
    %41 = tpu.matmul %40, %39, %cst_19 {dimension_numbers = #tpu.dot_dimension_numbers<[1], [1], [0], [0], [0, 0, 1, 0], [], []>} : vector<4x8xf32>, vector<128x8xf32>, vector<4x128xf32> -> vector<4x128xf32>
    %42 = vector.extract_strided_slice %7 {offsets = [24, 0], sizes = [4, 1], strides = [1, 1]} : vector<28x1xf32> to vector<4x1xf32>
    %43 = vector.broadcast %42 : vector<4x1xf32> to vector<4x128xf32>
    %44 = arith.addf %41, %43 : vector<4x128xf32>
    %45 = arith.addf %44, %6 : vector<4x128xf32>
    %c0_20 = arith.constant 0 : index
    %c0_21 = arith.constant 0 : index
    %c0_22 = arith.constant 0 : index
    %46 = vector.load %arg7[%c0_20, %c0_21, %c0_22] : memref<1x4x128xf32, #tpu.memory_space<vmem>>, vector<1x4x128xf32>
    %47 = vector.shape_cast %46 : vector<1x4x128xf32> to vector<4x128xf32>
    %48 = vector.shape_cast %45 : vector<4x128xf32> to vector<1x4x128xf32>
    tpu.vector_store %arg7[%c0_20, %c0_21, %c0_22], %48 {strides = array<i32>} : memref<1x4x128xf32, #tpu.memory_space<vmem>>, vector<1x4x128xf32>,
    return
  }
  func.func @transform_0(%arg0: i32, %arg1: i32) -> (i32, i32, i32) {
    %c0_i32 = arith.constant 0 : i32
    %c0_i32_0 = arith.constant 0 : i32
    %c0_i32_1 = arith.constant 0 : i32
    return %arg0, %c0_i32, %c0_i32_0 : i32, i32, i32
  }
  func.func @transform_1(%arg0: i32, %arg1: i32) -> (i32, i32) {
    %c0_i32 = arith.constant 0 : i32
    %c0_i32_0 = arith.constant 0 : i32
    %c0_i32_1 = arith.constant 0 : i32
    return %c0_i32, %c0_i32_0 : i32, i32
  }
  func.func @transform_2(%arg0: i32, %arg1: i32) -> (i32, i32) {
    %c0_i32 = arith.constant 0 : i32
    %c0_i32_0 = arith.constant 0 : i32
    %c0_i32_1 = arith.constant 0 : i32
    return %c0_i32, %c0_i32_0 : i32, i32
  }
  func.func @transform_3(%arg0: i32, %arg1: i32) -> (i32, i32) {
    %c0_i32 = arith.constant 0 : i32
    %c0_i32_0 = arith.constant 0 : i32
    %c0_i32_1 = arith.constant 0 : i32
    return %c0_i32, %c0_i32_0 : i32, i32
  }
  func.func @transform_4(%arg0: i32, %arg1: i32) -> (i32, i32) {
    %c0_i32 = arith.constant 0 : i32
    %c0_i32_0 = arith.constant 0 : i32
    %c0_i32_1 = arith.constant 0 : i32
    return %c0_i32, %c0_i32_0 : i32, i32
  }
  func.func @transform_5(%arg0: i32, %arg1: i32) -> (i32, i32, i32) {
    %c0_i32 = arith.constant 0 : i32
    %c0_i32_0 = arith.constant 0 : i32
    return %arg0, %c0_i32, %arg1 : i32, i32, i32
  }
}

</mosaic_0001>

<llo_original>
// kernel: tpu_custom_call.1
$region0: #{tpu_custom_call.1}
  #allocation0 [shape = 'u32[]', space=smem, size = 0x4, offset = 0x4, fixed_abs, tag = 'smem constant byte address 0x4 - core index']
  #allocation1 [shape = 'u32[72,128]{1,0:T(1,128)}', space=vmem, size = 0x9000, scoped, tag = 'internal scratch']
  %s0 = inlined_call_operand.vmem [shape: f32[2,4,128], index: 0, kind: input, shape index: {}]
  %s1 = inlined_call_operand.vmem [shape: f32[8,4], index: 1, kind: input, shape index: {}]
  %s2 = inlined_call_operand.vmem [shape: f32[16,4], index: 2, kind: input, shape index: {}]
  %s3 = inlined_call_operand.vmem [shape: f32[28,1], index: 3, kind: input, shape index: {}]
  %s4 = inlined_call_operand.vmem [shape: f32[4,8], index: 4, kind: input, shape index: {}]
  %s5 = inlined_call_operand.hbm [shape: f32[2,4,128], index: 5, kind: output, shape index: {}]
  %s6 = sld [smem:[#allocation0]]
  $region53: #{tpu_custom_call.1} parent=0
    _
  %s8 = ssub.s32 1, %s6
  %s9 = scalar_select 0, %s8, %s6
  $region1: #{tpu_custom_call.1} parent=0
    #allocation2 [shape = 'u8[4096]{0}', space=vmem, size = 0x1000, scoped, tag = 'output window, operand 0']
    #allocation3 [shape = 's32[2]{0}', space=sflag, size = 0x8, scoped, tag = 'scoped memory for tpu_custom_call.1']
    %10 = vsyncpa [#allocation3], 0
    %s11 = scalar_lea.sflag [#allocation3], 1
    %12 = vsyncpa %s11, 0
    loop: start=0, step=1, limit=4
    $region2: #{tpu_custom_call.1} parent=1 // loop_pre_header
      _
    $region3: #{tpu_custom_call.1} parent=1 // loop_header
      %s14 = sphi 0, %s18
      %p15 = scmp.ge.s32.totalorder %s14, 4
      %s21 = sphi 0, %s33
      %s22 = sphi 0, %s29
      %s23 = sphi 0, %s21
      %s24 = sphi 0, %s22
      %s25 = sphi 0, %s23
      %s26 = sphi 0, %s24
      %s36 = sphi 0, %s38
      %s39 = sphi 0, %s36
      %s40 = sphi 0, %s39
      %s56 = sphi 0, %s40
      %s60 = sphi 0, %s60
      %s62 = sphi 0, %s60
      %s63 = sphi 0, %s62
      %s77 = sphi 0, %s63
      %s81 = sphi 0, %s81
      %s83 = sphi 0, %s81
      %s84 = sphi 0, %s83
      %s98 = sphi 0, %s84
      %s102 = sphi 0, %s102
      %s104 = sphi 0, %s102
      %s105 = sphi 0, %s104
      %s119 = sphi 0, %s105
      %s123 = sphi 0, %s123
      %s125 = sphi 0, %s123
      %s126 = sphi 0, %s125
      %s140 = sphi 0, %s126
      %s148 = sphi 0, %s150
      %s151 = sphi 0, %s148
      %s152 = sphi 0, %s151
      %s168 = sphi 0, %s152
    $region4: #{tpu_custom_call.1} parent=1 // loop_header_branch
      %17 = sbr.rel (%p15) target = $region8
    $region5: #{tpu_custom_call.1} parent=1 // loop_body
      %s19 = ssub.s32 %s14, 1
      %s20 = ssub.s32 %s14, 2
      %s27 = sadd.s32 1, %s22
      %p28 = scmp.ge.s32.totalorder %s27, 1
      %s29 = scalar_select %p28, 0, %s27
      %s30 = sadd.s32 1, %s21
      %s31 = scalar_select %p28, %s30, %s21
      %p32 = scmp.ge.s32.totalorder %s31, 2
      %s33 = scalar_select %p32, 0, %s31
      %s34 = ssub.s32 %s21, %s33
      %p35 = scmp.eq.s32.totalorder %s34, 0
      %s37 = sadd.s32 %s36, 1
      %s38 = scalar_select %p35, %s36, %s37
      %p41 = pneg %p35
      %p42 = scmp.eq.s32.totalorder %s14, 1
      %p43 = por %p41, %p42
      %p44 = scmp.ne.s32.totalorder %s36, %s39
      %p45 = scmp.eq.s32.totalorder %s14, 0
      %p46 = por %p44, %p45
      %p47 = scmp.ne.s32.totalorder %s36, %s39
      %p48 = scmp.eq.s32.totalorder %s19, 1
      %p49 = por %p47, %p48
      %p50 = scmp.ne.s32.totalorder %s39, %s40
      %p51 = scmp.eq.s32.totalorder %s19, 0
      %p52 = por %p50, %p51
      %p53 = scmp.ne.s32.totalorder %s39, %s40
      %p54 = scmp.eq.s32.totalorder %s20, 1
      %p55 = por %p53, %p54
      %p57 = scmp.ne.s32.totalorder %s40, %s56
      %p58 = scmp.eq.s32.totalorder %s20, 0
      %p59 = por %p57, %p58
      %s61 = sadd.s32 %s60, 1
      %p64 = scmp.eq.s32.totalorder %s14, 1
      %p65 = scmp.ne.s32.totalorder %s60, %s62
      %p66 = scmp.eq.s32.totalorder %s14, 0
      %p67 = por %p65, %p66
      %p68 = scmp.ne.s32.totalorder %s60, %s62
      %p69 = scmp.eq.s32.totalorder %s19, 1
      %p70 = por %p68, %p69
      %p71 = scmp.ne.s32.totalorder %s62, %s63
      %p72 = scmp.eq.s32.totalorder %s19, 0
      %p73 = por %p71, %p72
      %p74 = scmp.ne.s32.totalorder %s62, %s63
      %p75 = scmp.eq.s32.totalorder %s20, 1
      %p76 = por %p74, %p75
      %p78 = scmp.ne.s32.totalorder %s63, %s77
      %p79 = scmp.eq.s32.totalorder %s20, 0
      %p80 = por %p78, %p79
      %s82 = sadd.s32 %s81, 1
      %p85 = scmp.eq.s32.totalorder %s14, 1
      %p86 = scmp.ne.s32.totalorder %s81, %s83
      %p87 = scmp.eq.s32.totalorder %s14, 0
      %p88 = por %p86, %p87
      %p89 = scmp.ne.s32.totalorder %s81, %s83
      %p90 = scmp.eq.s32.totalorder %s19, 1
      %p91 = por %p89, %p90
      %p92 = scmp.ne.s32.totalorder %s83, %s84
      %p93 = scmp.eq.s32.totalorder %s19, 0
      %p94 = por %p92, %p93
      %p95 = scmp.ne.s32.totalorder %s83, %s84
      %p96 = scmp.eq.s32.totalorder %s20, 1
      %p97 = por %p95, %p96
      %p99 = scmp.ne.s32.totalorder %s84, %s98
      %p100 = scmp.eq.s32.totalorder %s20, 0
      %p101 = por %p99, %p100
      %s103 = sadd.s32 %s102, 1
      %p106 = scmp.eq.s32.totalorder %s14, 1
      %p107 = scmp.ne.s32.totalorder %s102, %s104
      %p108 = scmp.eq.s32.totalorder %s14, 0
      %p109 = por %p107, %p108
      %p110 = scmp.ne.s32.totalorder %s102, %s104
      %p111 = scmp.eq.s32.totalorder %s19, 1
      %p112 = por %p110, %p111
      %p113 = scmp.ne.s32.totalorder %s104, %s105
      %p114 = scmp.eq.s32.totalorder %s19, 0
      %p115 = por %p113, %p114
      %p116 = scmp.ne.s32.totalorder %s104, %s105
      %p117 = scmp.eq.s32.totalorder %s20, 1
      %p118 = por %p116, %p117
      %p120 = scmp.ne.s32.totalorder %s105, %s119
      %p121 = scmp.eq.s32.totalorder %s20, 0
      %p122 = por %p120, %p121
      %s124 = sadd.s32 %s123, 1
      %p127 = scmp.eq.s32.totalorder %s14, 1
      %p128 = scmp.ne.s32.totalorder %s123, %s125
      %p129 = scmp.eq.s32.totalorder %s14, 0
      %p130 = por %p128, %p129
      %p131 = scmp.ne.s32.totalorder %s123, %s125
      %p132 = scmp.eq.s32.totalorder %s19, 1
      %p133 = por %p131, %p132
      %p134 = scmp.ne.s32.totalorder %s125, %s126
      %p135 = scmp.eq.s32.totalorder %s19, 0
      %p136 = por %p134, %p135
      %p137 = scmp.ne.s32.totalorder %s125, %s126
      %p138 = scmp.eq.s32.totalorder %s20, 1
      %p139 = por %p137, %p138
      %p141 = scmp.ne.s32.totalorder %s126, %s140
      %p142 = scmp.eq.s32.totalorder %s20, 0
      %p143 = por %p141, %p142
      %s144 = ssub.s32 %s21, %s33
      %s145 = ssub.s32 %s22, %s29
      %s146 = sor.u32 %s144, %s145
      %p147 = scmp.eq.s32.totalorder %s146, 0
      %s149 = sadd.s32 %s148, 1
      %s150 = scalar_select %p147, %s148, %s149
      %p153 = pneg %p147
      %p154 = scmp.eq.s32.totalorder %s14, 1
      %p155 = por %p153, %p154
      %p156 = scmp.ne.s32.totalorder %s148, %s151
      %p157 = scmp.eq.s32.totalorder %s14, 0
      %p158 = por %p156, %p157
      %p159 = scmp.ne.s32.totalorder %s148, %s151
      %p160 = scmp.eq.s32.totalorder %s19, 1
      %p161 = por %p159, %p160
      %p162 = scmp.ne.s32.totalorder %s151, %s152
      %p163 = scmp.eq.s32.totalorder %s19, 0
      %p164 = por %p162, %p163
      %p165 = scmp.ne.s32.totalorder %s151, %s152
      %p166 = scmp.eq.s32.totalorder %s20, 1
      %p167 = por %p165, %p166
      %p169 = scmp.ne.s32.totalorder %s152, %s168
      %p170 = scmp.eq.s32.totalorder %s20, 0
      %p171 = por %p169, %p170
      %p172 = scmp.le.s32.totalorder 1, %s14
      %p173 = scmp.lt.s32.totalorder %s14, 3
      %p174 = pnand %p172, %p173
      %p175 = pneg %p174
      // Predicated region
      $region9: #{tpu_custom_call.1} parent=5 // pred_check
        _
      $region10: #{tpu_custom_call.1} parent=5 // pred_check_branch
        %177 = sbr.rel (%p174) target = $region12
      $region11: #{tpu_custom_call.1} parent=5 // pred_region
        %s178 = ssub.s32 %s14, 1
        // Predicated region
        $region13: #{tpu_custom_call.1} parent=11 // pred_check
          %p179 = pneg %p73
        $region14: #{tpu_custom_call.1} parent=11 // pred_check_branch
          %181 = sbr.rel (%p179) target = $region16
        $region15: #{tpu_custom_call.1} parent=11 // pred_region
          _
        $region16: #{tpu_custom_call.1} parent=11 // pred_fallthru
          _
        // Predicated region
        $region17: #{tpu_custom_call.1} parent=11 // pred_check
          %p182 = pneg %p94
        $region18: #{tpu_custom_call.1} parent=11 // pred_check_branch
          %184 = sbr.rel (%p182) target = $region20
        $region19: #{tpu_custom_call.1} parent=11 // pred_region
          _
        $region20: #{tpu_custom_call.1} parent=11 // pred_fallthru
          _
        // Predicated region
        $region21: #{tpu_custom_call.1} parent=11 // pred_check
          %p185 = pneg %p115
        $region22: #{tpu_custom_call.1} parent=11 // pred_check_branch
          %187 = sbr.rel (%p185) target = $region24
        $region23: #{tpu_custom_call.1} parent=11 // pred_region
          _
        $region24: #{tpu_custom_call.1} parent=11 // pred_fallthru
          _
        // Predicated region
        $region25: #{tpu_custom_call.1} parent=11 // pred_check
          %p188 = pneg %p136
        $region26: #{tpu_custom_call.1} parent=11 // pred_check_branch
          %190 = sbr.rel (%p188) target = $region28
        $region27: #{tpu_custom_call.1} parent=11 // pred_region
          _
        $region28: #{tpu_custom_call.1} parent=11 // pred_fallthru
          _
      $region12: #{tpu_custom_call.1} parent=5 // pred_fallthru
        _
      %p191 = scmp.lt.s32.totalorder %s14, 2
      // Predicated region
      $region29: #{tpu_custom_call.1} parent=5 // pred_check
        %p192 = pneg %p191
      $region30: #{tpu_custom_call.1} parent=5 // pred_check_branch
        %194 = sbr.rel (%p192) target = $region32
      $region31: #{tpu_custom_call.1} parent=5 // pred_region
        // Predicated region
        $region33: #{tpu_custom_call.1} parent=31 // pred_check
          %p195 = pneg %p46
        $region34: #{tpu_custom_call.1} parent=31 // pred_check_branch
          %197 = sbr.rel (%p195) target = $region36
        $region35: #{tpu_custom_call.1} parent=31 // pred_region
          %p198 = scmp.lt.s32.totalorder %s21, 1
          %s199 = scalar_select %p198, %s21, 1
          %s200 = smul.addr %s199, 4
          %s201 = scalar_lea.vmem %s0, %s200
        $region36: #{tpu_custom_call.1} parent=31 // pred_fallthru
          _
      $region32: #{tpu_custom_call.1} parent=5 // pred_fallthru
        _
      %p202 = scmp.le.s32.totalorder 1, %s14
      %p203 = scmp.lt.s32.totalorder %s14, 3
      %p204 = pnand %p202, %p203
      %p205 = pneg %p204
      // Predicated region
      $region37: #{tpu_custom_call.1} parent=5 // pred_check
        _
      $region38: #{tpu_custom_call.1} parent=5 // pred_check_branch
        %207 = sbr.rel (%p204) target = $region40
      $region39: #{tpu_custom_call.1} parent=5 // pred_region
        %s208 = ssub.s32 %s14, 1
        %p209 = scmp.lt.s32.totalorder %s23, 1
        %s210 = scalar_select %p209, %s23, 1
        %s211 = smul.addr %s210, 4
        %s212 = scalar_lea.vmem %s0, %s211
        %p213 = pneg %p52
        %p214 = pneg %p49
        %p215 = pneg %p73
        %p216 = pneg %p70
        %p217 = pneg %p94
        %p218 = pneg %p91
        %p219 = pneg %p115
        %p220 = pneg %p112
        %p221 = pneg %p136
        %p222 = pneg %p133
        %p223 = pneg %p164
        %p224 = pneg %p161
        %s225 = sand.u32 %s151, 1
        %s226 = scalar_lea.sflag [#allocation3], %s225
        %s227 = sand.u32 %s151, 1
        %s228 = smul.addr %s227, 4
        %s229 = scalar_lea.vmem [#allocation2], %s228
        %p230 = scmp.lt.s32.totalorder %s23, 1
        %s231 = scalar_select %p230, %s23, 1
        %s232 = smul.addr %s231, 4
        %s233 = scalar_lea.vmem %s0, %s232
        %s235 = smul.u32 %s24, 128
        %v236 = vld [vmem:[%s233] sm:$0xf]
        %s237 = sshra.s32 %s235, 7
        %s238 = sand.u32 %s235, 127
        %s239 = scalar_lea.vmem %s233, %s237
        %v240 = vld [vmem:[%s239] sm:$0xf]
        %v241 = vld [vmem:[%s3] sm:$0xff]
        %v242 = vld [vmem:[%s3 + $0x8] sm:$0xff]
        %v243 = vld [vmem:[%s3 + $0x10] sm:$0xff]
        %v244 = vld [vmem:[%s3 + $0x18] sm:$0xf]
        %v245 = vld [vmem:[%s2] sm:$0xff]
        %v246 = vld [vmem:[%s2 + $0x8] sm:$0xff]
        %248 = vset.pattern.permute.xlu0 0
        %249 = vperm.xlu0 %248, %v242
        %v250 = vpop.permute.xlu0 %249
        %253 = vset.pattern.permute.xlu0 0
        %254 = vperm.xlu0 %253, %v243
        %v255 = vpop.permute.xlu0 %254
        %vm257 = vcmask 31744
        %v259 = vsel %vm257, %v245, 0
        %v262 = vsel %vm257, %v246, 0
        %vm264 = vcmask 1043456
        %v266 = vsel %vm264, %v236, 0
        %268 = vmatpush.msra.mxu0 0.0
        %269 = vmatpush.msra.mxu0 0.0
        %270 = vmatpush.msra.mxu0 0.0
        %271 = vmatpush.msra.mxu0 0.0
        %272 = vmatpush.msra.mxu0 0.0
        %273 = vmatpush.msra.mxu0 0.0
        %274 = vmatpush.msra.mxu0 0.0
        %275 = vmatpush.msra.mxu0 0.0
        %276 = vmatpush.msra.mxu0 0.0
        %277 = vmatpush.msra.mxu0 0.0
        %278 = vmatpush.msra.mxu0 0.0
        %279 = vmatpush.msra.mxu0 0.0
        %280 = vmatpush.msra.mxu0 0.0
        %281 = vmatpush.msra.mxu0 0.0
        %282 = vmatpush.msra.mxu0 0.0
        %283 = vmatpush.msra.mxu0 %v266
        %284 = vmatmul.f32.gmra.mxu0 %v259
        %v285 = vpop.f32.mrf.mxu0
        %v286 = vadd.f32 %v250, %v285
        %287 = vmatmul.f32.gmra.mxu0 %v262
        %v288 = vpop.f32.mrf.mxu0
        %v289 = vadd.f32 %v255, %v288
        %290 = vdwg.mxu0
        %v291 = vmax.f32 %v286, 0.0
        %v292 = vld [vmem:[%s1] sm:$0xff]
        %294 = vset.pattern.permute.xlu0 0
        %295 = vperm.xlu0 %294, %v241
        %v296 = vpop.permute.xlu0 %295
        %v299 = vsel %vm257, %v292, 0
        %v302 = vsel %vm264, %v240, 0
        %304 = vmatpush.msra.mxu0 0.0
        %305 = vmatpush.msra.mxu0 0.0
        %306 = vmatpush.msra.mxu0 0.0
        %307 = vmatpush.msra.mxu0 0.0
        %308 = vmatpush.msra.mxu0 0.0
        %309 = vmatpush.msra.mxu0 0.0
        %310 = vmatpush.msra.mxu0 0.0
        %311 = vmatpush.msra.mxu0 0.0
        %312 = vmatpush.msra.mxu0 0.0
        %313 = vmatpush.msra.mxu0 0.0
        %314 = vmatpush.msra.mxu0 0.0
        %315 = vmatpush.msra.mxu0 0.0
        %316 = vmatpush.msra.mxu0 0.0
        %317 = vmatpush.msra.mxu0 0.0
        %318 = vmatpush.msra.mxu0 0.0
        %319 = vmatpush.msra.mxu0 %v302
        %320 = vmatmul.f32.gmra.mxu0 %v299
        %v321 = vpop.f32.mrf.mxu0
        %v322 = vadd.f32 %v296, %v321
        %323 = vdwg.mxu0
        %v324 = vmax.f32 %v322, 0.0
        %v325 = vpack.c.bf16 %v324, %v324
        %v326 = vpack.c.bf16 %v291, %v291
        %327 = vxpose.xlu0.c.b16.start [1/8] %v325, 128
        %328 = vxpose.xlu0.c.b16.cont [2/8] 0, 128
        %329 = vxpose.xlu0.c.b16.cont [3/8] 0, 128
        %330 = vxpose.xlu0.c.b16.cont [4/8] 0, 128
        %331 = vxpose.xlu0.c.b16.cont [5/8] 0, 128
        %332 = vxpose.xlu0.c.b16.cont [6/8] 0, 128
        %333 = vxpose.xlu0.c.b16.cont [7/8] 0, 128
        %334 = vxpose.xlu0.c.b16.end [8/8] 0, 128
        %v335 = vpop.trf.xlu0
        %v336 = vpop.trf.xlu0
        %v337 = vpop.trf.xlu0
        %v338 = vpop.trf.xlu0
        %v339 = vpop.trf.xlu0
        %v340 = vpop.trf.xlu0
        %v341 = vpop.trf.xlu0
        %v342 = vpop.trf.xlu0
        %vm343 = vcmask 64512
        %v345 = vsel %vm343, %v335, 0
        %v348 = vsel %vm343, %v336, 0
        %v351 = vsel %vm343, %v337, 0
        %v354 = vsel %vm343, %v338, 0
        %v357 = vsel %vm343, %v339, 0
        %v360 = vsel %vm343, %v340, 0
        %v363 = vsel %vm343, %v341, 0
        %v366 = vsel %vm343, %v342, 0
        %v369 = vsel %vm264, %v326, 0
        %371 = vmatpush.bf16.msra.mxu0 0
        %372 = vmatpush.bf16.msra.mxu0 0
        %373 = vmatpush.bf16.msra.mxu0 0
        %374 = vmatpush.bf16.msra.mxu0 0
        %375 = vmatpush.bf16.msra.mxu0 0
        %376 = vmatpush.bf16.msra.mxu0 0
        %377 = vmatpush.bf16.msra.mxu0 0
        %378 = vmatpush.bf16.msra.mxu0 %v369
        %379 = vmatmul.bf16.gmra.mxu0 %v345
        %v380 = vpop.f32.mrf.mxu0
        %v381 = vadd.f32 0.0, %v380
        %v382 = vpop.f32.mrf.mxu0
        %v383 = vadd.f32 0.0, %v382
        %384 = vmatmul.bf16.gmra.mxu0 %v348
        %v385 = vpop.f32.mrf.mxu0
        %v386 = vadd.f32 0.0, %v385
        %v387 = vpop.f32.mrf.mxu0
        %v388 = vadd.f32 0.0, %v387
        %389 = vmatmul.bf16.gmra.mxu0 %v351
        %v390 = vpop.f32.mrf.mxu0
        %v391 = vadd.f32 0.0, %v390
        %v392 = vpop.f32.mrf.mxu0
        %v393 = vadd.f32 0.0, %v392
        %394 = vmatmul.bf16.gmra.mxu0 %v354
        %v395 = vpop.f32.mrf.mxu0
        %v396 = vadd.f32 0.0, %v395
        %v397 = vpop.f32.mrf.mxu0
        %v398 = vadd.f32 0.0, %v397
        %399 = vmatmul.bf16.gmra.mxu0 %v357
        %v400 = vpop.f32.mrf.mxu0
        %v401 = vadd.f32 0.0, %v400
        %v402 = vpop.f32.mrf.mxu0
        %v403 = vadd.f32 0.0, %v402
        %404 = vmatmul.bf16.gmra.mxu0 %v360
        %v405 = vpop.f32.mrf.mxu0
        %v406 = vadd.f32 0.0, %v405
        %v407 = vpop.f32.mrf.mxu0
        %v408 = vadd.f32 0.0, %v407
        %409 = vmatmul.bf16.gmra.mxu0 %v363
        %v410 = vpop.f32.mrf.mxu0
        %v411 = vadd.f32 0.0, %v410
        %v412 = vpop.f32.mrf.mxu0
        %v413 = vadd.f32 0.0, %v412
        %414 = vmatmul.bf16.gmra.mxu0 %v366
        %v415 = vpop.f32.mrf.mxu0
        %v416 = vadd.f32 0.0, %v415
        %v417 = vpop.f32.mrf.mxu0
        %v418 = vadd.f32 0.0, %v417
        %419 = vdwg.mxu0
        %420 = vmax.xlane.f32.xlu0 %v381
        %v421 = vpop.xlane.xlu0 %420
        %422 = vmax.xlane.f32.xlu0 %v383
        %v423 = vpop.xlane.xlu0 %422
        %424 = vmax.xlane.f32.xlu0 %v386
        %v425 = vpop.xlane.xlu0 %424
        %426 = vmax.xlane.f32.xlu0 %v388
        %v427 = vpop.xlane.xlu0 %426
        %428 = vmax.xlane.f32.xlu0 %v391
        %v429 = vpop.xlane.xlu0 %428
        %430 = vmax.xlane.f32.xlu0 %v393
        %v431 = vpop.xlane.xlu0 %430
        %432 = vmax.xlane.f32.xlu0 %v396
        %v433 = vpop.xlane.xlu0 %432
        %434 = vmax.xlane.f32.xlu0 %v398
        %v435 = vpop.xlane.xlu0 %434
        %436 = vmax.xlane.f32.xlu0 %v401
        %v437 = vpop.xlane.xlu0 %436
        %438 = vmax.xlane.f32.xlu0 %v403
        %v439 = vpop.xlane.xlu0 %438
        %440 = vmax.xlane.f32.xlu0 %v406
        %v441 = vpop.xlane.xlu0 %440
        %442 = vmax.xlane.f32.xlu0 %v408
        %v443 = vpop.xlane.xlu0 %442
        %444 = vmax.xlane.f32.xlu0 %v411
        %v445 = vpop.xlane.xlu0 %444
        %446 = vmax.xlane.f32.xlu0 %v413
        %v447 = vpop.xlane.xlu0 %446
        %448 = vmax.xlane.f32.xlu0 %v416
        %v449 = vpop.xlane.xlu0 %448
        %450 = vmax.xlane.f32.xlu0 %v418
        %v451 = vpop.xlane.xlu0 %450
        %v452 = vsub.f32 %v381, %v421
        %v453 = vsub.f32 %v383, %v423
        %v454 = vsub.f32 %v386, %v425
        %v455 = vsub.f32 %v388, %v427
        %v456 = vsub.f32 %v391, %v429
        %v457 = vsub.f32 %v393, %v431
        %v458 = vsub.f32 %v396, %v433
        %v459 = vsub.f32 %v398, %v435
        %v460 = vsub.f32 %v401, %v437
        %v461 = vsub.f32 %v403, %v439
        %v462 = vsub.f32 %v406, %v441
        %v463 = vsub.f32 %v408, %v443
        %v464 = vsub.f32 %v411, %v445
        %v465 = vsub.f32 %v413, %v447
        %v466 = vsub.f32 %v416, %v449
        %v467 = vsub.f32 %v418, %v451
        %v468 = vmul.f32 %v452, 1.442695
        %v469 = vpow.pop %v468
        %v470 = vmul.f32 %v453, 1.442695
        %v471 = vpow.pop %v470
        %v472 = vmul.f32 %v454, 1.442695
        %v473 = vpow.pop %v472
        %v474 = vmul.f32 %v455, 1.442695
        %v475 = vpow.pop %v474
        %v476 = vmul.f32 %v456, 1.442695
        %v477 = vpow.pop %v476
        %v478 = vmul.f32 %v457, 1.442695
        %v479 = vpow.pop %v478
        %v480 = vmul.f32 %v458, 1.442695
        %v481 = vpow.pop %v480
        %v482 = vmul.f32 %v459, 1.442695
        %v483 = vpow.pop %v482
        %v484 = vmul.f32 %v460, 1.442695
        %v485 = vpow.pop %v484
        %v486 = vmul.f32 %v461, 1.442695
        %v487 = vpow.pop %v486
        %v488 = vmul.f32 %v462, 1.442695
        %v489 = vpow.pop %v488
        %v490 = vmul.f32 %v463, 1.442695
        %v491 = vpow.pop %v490
        %v492 = vmul.f32 %v464, 1.442695
        %v493 = vpow.pop %v492
        %v494 = vmul.f32 %v465, 1.442695
        %v495 = vpow.pop %v494
        %v496 = vmul.f32 %v466, 1.442695
        %v497 = vpow.pop %v496
        %v498 = vmul.f32 %v467, 1.442695
        %v499 = vpow.pop %v498
        %500 = vadd.xlane.f32.xlu0 %v469
        %v501 = vpop.xlane.xlu0 %500
        %502 = vadd.xlane.f32.xlu0 %v471
        %v503 = vpop.xlane.xlu0 %502
        %504 = vadd.xlane.f32.xlu0 %v473
        %v505 = vpop.xlane.xlu0 %504
        %506 = vadd.xlane.f32.xlu0 %v475
        %v507 = vpop.xlane.xlu0 %506
        %508 = vadd.xlane.f32.xlu0 %v477
        %v509 = vpop.xlane.xlu0 %508
        %510 = vadd.xlane.f32.xlu0 %v479
        %v511 = vpop.xlane.xlu0 %510
        %512 = vadd.xlane.f32.xlu0 %v481
        %v513 = vpop.xlane.xlu0 %512
        %514 = vadd.xlane.f32.xlu0 %v483
        %v515 = vpop.xlane.xlu0 %514
        %516 = vadd.xlane.f32.xlu0 %v485
        %v517 = vpop.xlane.xlu0 %516
        %518 = vadd.xlane.f32.xlu0 %v487
        %v519 = vpop.xlane.xlu0 %518
        %520 = vadd.xlane.f32.xlu0 %v489
        %v521 = vpop.xlane.xlu0 %520
        %522 = vadd.xlane.f32.xlu0 %v491
        %v523 = vpop.xlane.xlu0 %522
        %524 = vadd.xlane.f32.xlu0 %v493
        %v525 = vpop.xlane.xlu0 %524
        %526 = vadd.xlane.f32.xlu0 %v495
        %v527 = vpop.xlane.xlu0 %526
        %528 = vadd.xlane.f32.xlu0 %v497
        %v529 = vpop.xlane.xlu0 %528
        %530 = vadd.xlane.f32.xlu0 %v499
        %v531 = vpop.xlane.xlu0 %530
        %v532 = vrcp.pop %v501
        %v533 = vrcp.pop %v503
        %v534 = vrcp.pop %v505
        %v535 = vrcp.pop %v507
        %v536 = vrcp.pop %v509
        %v537 = vrcp.pop %v511
        %v538 = vrcp.pop %v513
        %v539 = vrcp.pop %v515
        %v540 = vrcp.pop %v517
        %v541 = vrcp.pop %v519
        %v542 = vrcp.pop %v521
        %v543 = vrcp.pop %v523
        %v544 = vrcp.pop %v525
        %v545 = vrcp.pop %v527
        %v546 = vrcp.pop %v529
        %v547 = vrcp.pop %v531
        %v548 = vmul.f32 %v469, %v532
        %v549 = vmul.f32 %v471, %v533
        %v550 = vmul.f32 %v473, %v534
        %v551 = vmul.f32 %v475, %v535
        %v552 = vmul.f32 %v477, %v536
        %v553 = vmul.f32 %v479, %v537
        %v554 = vmul.f32 %v481, %v538
        %v555 = vmul.f32 %v483, %v539
        %v556 = vmul.f32 %v485, %v540
        %v557 = vmul.f32 %v487, %v541
        %v558 = vmul.f32 %v489, %v542
        %v559 = vmul.f32 %v491, %v543
        %v560 = vmul.f32 %v493, %v544
        %v561 = vmul.f32 %v495, %v545
        %v562 = vmul.f32 %v497, %v546
        %v563 = vmul.f32 %v499, %v547
        %v564 = vpack.c.bf16 %v549, %v548
        %v565 = vpack.c.bf16 %v551, %v550
        %v566 = vpack.c.bf16 %v553, %v552
        %v567 = vpack.c.bf16 %v555, %v554
        %v568 = vpack.c.bf16 %v557, %v556
        %v569 = vpack.c.bf16 %v559, %v558
        %v570 = vpack.c.bf16 %v561, %v560
        %v571 = vpack.c.bf16 %v563, %v562
        %v572 = vpack.c.bf16 %v289, %v289
        %573 = vmatpush.bf16.xpose.msra.mxu0 0
        %574 = vmatpush.bf16.xpose.msra.mxu0 0
        %575 = vmatpush.bf16.xpose.msra.mxu0 0
        %576 = vmatpush.bf16.xpose.msra.mxu0 0
        %577 = vmatpush.bf16.xpose.msra.mxu0 0
        %578 = vmatpush.bf16.xpose.msra.mxu0 0
        %579 = vmatpush.bf16.xpose.msra.mxu0 0
        %580 = vmatpush.bf16.xpose.msra.mxu0 %v572
        %581 = vmatmul.bf16.gmra.mxu0 %v564
        %v582 = vpop.f32.mrf.mxu0
        %v583 = vadd.f32 0.0, %v582
        %v584 = vpop.f32.mrf.mxu0
        %v585 = vadd.f32 0.0, %v584
        %586 = vmatmul.bf16.gmra.mxu0 %v565
        %v587 = vpop.f32.mrf.mxu0
        %v588 = vadd.f32 0.0, %v587
        %v589 = vpop.f32.mrf.mxu0
        %v590 = vadd.f32 0.0, %v589
        %591 = vmatmul.bf16.gmra.mxu0 %v566
        %v592 = vpop.f32.mrf.mxu0
        %v593 = vadd.f32 0.0, %v592
        %v594 = vpop.f32.mrf.mxu0
        %v595 = vadd.f32 0.0, %v594
        %596 = vmatmul.bf16.gmra.mxu0 %v567
        %v597 = vpop.f32.mrf.mxu0
        %v598 = vadd.f32 0.0, %v597
        %v599 = vpop.f32.mrf.mxu0
        %v600 = vadd.f32 0.0, %v599
        %601 = vmatmul.bf16.gmra.mxu0 %v568
        %v602 = vpop.f32.mrf.mxu0
        %v603 = vadd.f32 0.0, %v602
        %v604 = vpop.f32.mrf.mxu0
        %v605 = vadd.f32 0.0, %v604
        %606 = vmatmul.bf16.gmra.mxu0 %v569
        %v607 = vpop.f32.mrf.mxu0
        %v608 = vadd.f32 0.0, %v607
        %v609 = vpop.f32.mrf.mxu0
        %v610 = vadd.f32 0.0, %v609
        %611 = vmatmul.bf16.gmra.mxu0 %v570
        %v612 = vpop.f32.mrf.mxu0
        %v613 = vadd.f32 0.0, %v612
        %v614 = vpop.f32.mrf.mxu0
        %v615 = vadd.f32 0.0, %v614
        %616 = vmatmul.bf16.gmra.mxu0 %v571
        %v617 = vpop.f32.mrf.mxu0
        %v618 = vadd.f32 0.0, %v617
        %v619 = vpop.f32.mrf.mxu0
        %v620 = vadd.f32 0.0, %v619
        %621 = vdwg.mxu0
        %v622 = vld [vmem:[%s4] sm:$0xf]
        %624 = vset.pattern.permute.xlu0 0
        %625 = vperm.xlu0 %624, %v244
        %v626 = vpop.permute.xlu0 %625
        %v629 = vsel %vm343, %v622, 0
        %v632 = vsel %vm343, %v583, 0
        %v635 = vsel %vm343, %v585, 0
        %v638 = vsel %vm343, %v588, 0
        %v641 = vsel %vm343, %v590, 0
        %v644 = vsel %vm343, %v593, 0
        %v647 = vsel %vm343, %v595, 0
        %v650 = vsel %vm343, %v598, 0
        %v653 = vsel %vm343, %v600, 0
        %v656 = vsel %vm343, %v603, 0
        %v659 = vsel %vm343, %v605, 0
        %v662 = vsel %vm343, %v608, 0
        %v665 = vsel %vm343, %v610, 0
        %v668 = vsel %vm343, %v613, 0
        %v671 = vsel %vm343, %v615, 0
        %v674 = vsel %vm343, %v618, 0
        %v677 = vsel %vm343, %v620, 0
        %679 = vmatpush.xpose.msra.mxu0 %v677
        %680 = vmatpush.xpose.msra.mxu0 %v674
        %681 = vmatpush.xpose.msra.mxu0 %v671
        %682 = vmatpush.xpose.msra.mxu0 %v668
        %683 = vmatpush.xpose.msra.mxu0 %v665
        %684 = vmatpush.xpose.msra.mxu0 %v662
        %685 = vmatpush.xpose.msra.mxu0 %v659
        %686 = vmatpush.xpose.msra.mxu0 %v656
        %687 = vmatpush.xpose.msra.mxu0 %v653
        %688 = vmatpush.xpose.msra.mxu0 %v650
        %689 = vmatpush.xpose.msra.mxu0 %v647
        %690 = vmatpush.xpose.msra.mxu0 %v644
        %691 = vmatpush.xpose.msra.mxu0 %v641
        %692 = vmatpush.xpose.msra.mxu0 %v638
        %693 = vmatpush.xpose.msra.mxu0 %v635
        %694 = vmatpush.xpose.msra.mxu0 %v632
        %695 = vmatmul.f32.gmra.mxu0 %v629
        %v696 = vpop.f32.mrf.mxu0
        %v697 = vadd.f32 %v626, %v696
        %698 = vdwg.mxu0
        %v699 = vadd.f32 %v697, %v240
        %700 = vst [vmem:[%s229] sm:$0xf] %v699
        %s701 = sand.u32 %s151, 1
        %s702 = scalar_lea.sflag [#allocation3], %s701
        %s703 = sand.u32 %s151, 1
        %s704 = smul.addr %s703, 4
        %s705 = scalar_lea.vmem [#allocation2], %s704
        // Predicated region
        $region41: #{tpu_custom_call.1} parent=39 // pred_check
          %p706 = pneg %p161
        $region42: #{tpu_custom_call.1} parent=39 // pred_check_branch
          %708 = sbr.rel (%p706) target = $region44
        $region43: #{tpu_custom_call.1} parent=39 // pred_region
          %710 = vsyncadd %s702, 0
          %s711 = sadd.s32 %s24, %s23
          %s712 = smul.addr %s711, 4
          %s713 = scalar_lea.hbm %s5, %s712
          %s715 = sshll.u32 %s705, 4
          %s716 = int_to_ptr.vmem [resolvable:$true] %s715
          %s717 = sshll.u32 %s713, 4
          %s718 = int_to_ptr.hbm [resolvable:$true] %s717
          %720 = dma.vmem_to_hbm [thread:$0]  %s716, 64, %s718, %s702
        $region44: #{tpu_custom_call.1} parent=39 // pred_fallthru
          _
      $region40: #{tpu_custom_call.1} parent=5 // pred_fallthru
        _
      %p721 = scmp.le.s32.totalorder 2, %s14
      // Predicated region
      $region45: #{tpu_custom_call.1} parent=5 // pred_check
        %p722 = pneg %p721
      $region46: #{tpu_custom_call.1} parent=5 // pred_check_branch
        %724 = sbr.rel (%p722) target = $region48
      $region47: #{tpu_custom_call.1} parent=5 // pred_region
        %s725 = ssub.s32 %s14, 2
        // Predicated region
        $region49: #{tpu_custom_call.1} parent=47 // pred_check
          %p726 = pneg %p167
        $region50: #{tpu_custom_call.1} parent=47 // pred_check_branch
          %728 = sbr.rel (%p726) target = $region52
        $region51: #{tpu_custom_call.1} parent=47 // pred_region
          %s729 = sand.u32 %s152, 1
          %s730 = scalar_lea.sflag [#allocation3], %s729
          %s731 = sand.u32 %s152, 1
          %s732 = smul.addr %s731, 4
          %s733 = scalar_lea.vmem [#allocation2], %s732
          %735 = dma.done %s730, 64
        $region52: #{tpu_custom_call.1} parent=47 // pred_fallthru
          _
      $region48: #{tpu_custom_call.1} parent=5 // pred_fallthru
        _
    $region6: #{tpu_custom_call.1} parent=1 // loop_footer
      %s18 = sadd.s32 1, %s14
    $region7: #{tpu_custom_call.1} parent=1 // loop_footer_branch
      %13 = sbr.rel target = $region3
    $region8: #{tpu_custom_call.1} parent=1 // loop_exit
      _
    %736 = vsyncpa [#allocation3], 1
    %s737 = scalar_lea.sflag [#allocation3], 1
    %738 = vsyncpa %s737, 1

</llo_original>
